<compile_context>
chip_gen: v7x
topology: tpu7x:2x2x1
jax: 0.10.0
libtpu: 0.0.40
codegen_flags: <defaults>
</compile_context>

<pallas_src>
import math
import functools

import jax
import jax.numpy as jnp
from jax.experimental import pallas as pl
from jax.experimental.pallas import tpu as pltpu

HIDDEN = 256
IN_DIM = 9            # 3 * 3
OUT_DIM = 18          # 2 * 3 * 3
OUT_PAD = 128         # lane-aligned padded output feature dim (keep 128 for unmasked vst)
DEFAULT_TILE_B = 512  # batch tile (multiple of 256 for v6e/v7x MXU, of 128 for v5e)


def _round_up(x, m):
    return ((x + m - 1) // m) * m


def actor_mlp_kernel(alpha_ref,
                     x_ref,
                     w1_ref, b1_ref,
                     w2_ref, b2_ref,
                     w3_ref, b3_ref,
                     w4_ref, b4_ref,
                     o_ref):
    """Fused 4-layer MLP with PReLU activations on one batch tile.

    alpha_ref: (1, 3) f32 in SMEM -- PReLU slopes.
    x_ref:     (TILE_B, 9) f32
    w1_ref:    (9, 256) f32      b1_ref: (1, 256) f32
    w2_ref:    (256, 256) bf16   b2_ref: (1, 256) f32
    w3_ref:    (256, 256) bf16   b3_ref: (1, 256) f32
    w4_ref:    (256, 128) bf16   b4_ref: (1, 128) f32
    o_ref:     (TILE_B, 128) f32
    """

    def prelu(h, a):
        # PReLU(x) = x if x > 0 else a * x   (f32 elementwise)
        return jnp.where(h > 0, h, a * h)

    x = x_ref[...]                                               # (T, 9) f32

    # Layer 1: K = 9 is tiny -> keep f32 operands (negligible MXU cost).
    h = jnp.dot(x, w1_ref[...], preferred_element_type=jnp.float32) + b1_ref[...]
    # Dropout(p=0.1) -> identity in inference mode.
    h = prelu(h, alpha_ref[0, 0])

    # Layers 2-4: bf16 operands on the MXU, f32 accumulation.
    h = jnp.dot(h.astype(jnp.bfloat16), w2_ref[...],
                preferred_element_type=jnp.float32) + b2_ref[...]
    h = prelu(h, alpha_ref[0, 1])

    h = jnp.dot(h.astype(jnp.bfloat16), w3_ref[...],
                preferred_element_type=jnp.float32) + b3_ref[...]
    h = prelu(h, alpha_ref[0, 2])

    h = jnp.dot(h.astype(jnp.bfloat16), w4_ref[...],
                preferred_element_type=jnp.float32) + b4_ref[...]

    o_ref[...] = h.astype(o_ref.dtype)


def prepare_actor_params(params):
    """One-time pad/cast of parameters for the kernel (do NOT rebuild per forward)."""
    (w1, b1), (w2, b2), (w3, b3), (w4, b4), alphas = params
    alpha = alphas.reshape(1, 3).astype(jnp.float32)
    w1p = w1.astype(jnp.float32)                                   # (9, 256)
    b1p = b1.reshape(1, HIDDEN).astype(jnp.float32)
    w2p = w2.astype(jnp.bfloat16)                                  # (256, 256)
    b2p = b2.reshape(1, HIDDEN).astype(jnp.float32)
    w3p = w3.astype(jnp.bfloat16)                                  # (256, 256)
    b3p = b3.reshape(1, HIDDEN).astype(jnp.float32)
    w4p = jnp.zeros((HIDDEN, OUT_PAD), jnp.bfloat16).at[:, :OUT_DIM].set(
        w4.astype(jnp.bfloat16))                                   # (256, 128)
    b4p = jnp.zeros((1, OUT_PAD), jnp.float32).at[0, :OUT_DIM].set(b4)
    return (alpha, w1p, b1p, w2p, b2p, w3p, b3p, w4p, b4p)


@functools.partial(jax.jit, static_argnames=("tile_b",))
def actor_forward(state, prepped, tile_b=DEFAULT_TILE_B):
    """Equivalent of Actor.forward(state): MLP(state.reshape(B, -1))."""
    B = state.shape[0]
    x = state.reshape(B, -1).astype(jnp.float32)                   # (B, 9)
    assert x.shape[1] == IN_DIM

    # Choose the batch tile: one tile for small B, TILE_B tiles otherwise.
    Bp = _round_up(max(B, 8), 8)
    if Bp <= tile_b:
        tile = Bp
    else:
        tile = tile_b
        Bp = _round_up(B, tile_b)
    if Bp != B:
        x = jnp.pad(x, ((0, Bp - B), (0, 0)))                      # cheap: (Bp, 9) only

    (alpha, w1p, b1p, w2p, b2p, w3p, b3p, w4p, b4p) = prepped

    resident = lambda shp: pl.BlockSpec(shp, lambda i: (0, 0))     # stays in VMEM, one DMA

    out_pad = pl.pallas_call(
        actor_mlp_kernel,
        out_shape=jax.ShapeDtypeStruct((Bp, OUT_PAD), jnp.float32),
        grid_spec=pltpu.PrefetchScalarGridSpec(
            num_scalar_prefetch=0,
            grid=(Bp // tile,),
            in_specs=[
                pl.BlockSpec(memory_space=pltpu.MemorySpace.SMEM),   # alpha (scalars)
                pl.BlockSpec((tile, IN_DIM), lambda i: (i, 0)),      # x batch tile
                resident((IN_DIM, HIDDEN)), resident((1, HIDDEN)),   # w1, b1
                resident((HIDDEN, HIDDEN)), resident((1, HIDDEN)),   # w2, b2
                resident((HIDDEN, HIDDEN)), resident((1, HIDDEN)),   # w3, b3
                resident((HIDDEN, OUT_PAD)), resident((1, OUT_PAD)), # w4, b4
            ],
            out_specs=pl.BlockSpec((tile, OUT_PAD), lambda i: (i, 0)),
        ),
        compiler_params=pltpu.CompilerParams(
            dimension_semantics=("parallel",)),                      # v7x: 2 TCs share batch
    )(alpha, x, w1p, b1p, w2p, b2p, w3p, b3p, w4p, b4p)

    # TODO(synk): drop this slice if the consumer can read the padded (Bp, 128) layout directly.
    return out_pad[:B, :OUT_DIM]


def init_actor_params(key):
    """Deterministic init mirroring the PyTorch module:
    Linear weights ~ xavier_normal_, biases = 0, PReLU slope = 0.25."""
    dims = [(IN_DIM, HIDDEN), (HIDDEN, HIDDEN), (HIDDEN, HIDDEN), (HIDDEN, OUT_DIM)]
    params = []
    for fan_in, fan_out in dims:
        key, sub = jax.random.split(key)
        std = math.sqrt(2.0 / (fan_in + fan_out))
        # stored as (fan_in, fan_out) so forward is x @ W  (== x @ W_torch.T)
        w = std * jax.random.normal(sub, (fan_in, fan_out), jnp.float32)
        b = jnp.zeros((fan_out,), jnp.float32)
        params.append((w, b))
    alphas = jnp.full((3,), 0.25, jnp.float32)  # PReLU default init
    return (*params, alphas)


if __name__ == "__main__":
    key = jax.random.PRNGKey(0)
    key, pkey, xkey1, xkey2 = jax.random.split(key, 4)

    params = init_actor_params(pkey)
    prepped = prepare_actor_params(params)   # one-time pad/cast

    # Pure-JAX f32 reference of the module forward.
    def ref(x, params):
        (w1, b1), (w2, b2), (w3, b3), (w4, b4), a = params
        h = x.reshape(x.shape[0], -1)
        def prelu(v, s):
            return jnp.where(v > 0, v, s * v)
        h = prelu(h @ w1 + b1, a[0])
        h = prelu(h @ w2 + b2, a[1])
        h = prelu(h @ w3 + b3, a[2])
        return h @ w4 + b4

    # Small batch (single-tile grid), same shape as the module spec: (B=2, 3, 3).
    state_small = jax.random.normal(xkey1, (2, 3, 3), jnp.float32)
    out_small = jax.block_until_ready(actor_forward(state_small, prepped))
    assert out_small.shape == (2, OUT_DIM), out_small.shape
    assert jnp.all(jnp.isfinite(out_small))
    # bf16 matmuls with f32 accumulation -> looser tolerance than pure f32.
    assert jnp.allclose(out_small, ref(state_small, params), atol=3e-2, rtol=3e-2)

    # Larger, non-multiple batch exercises batch padding + a multi-step grid.
    state_big = jax.random.normal(xkey2, (1000, 3, 3), jnp.float32)
    out_big = jax.block_until_ready(actor_forward(state_big, prepped))
    assert out_big.shape == (1000, OUT_DIM), out_big.shape
    assert jnp.all(jnp.isfinite(out_big))
    assert jnp.allclose(out_big, ref(state_big, params), atol=3e-2, rtol=3e-2)

    print("KERNEL_OK")
</pallas_src>

<mosaic_0001>
module attributes {stable_mosaic.version = 11 : i64} {
  func.func @actor_mlp_kernel(%arg0: i32, %arg1: memref<1x3xf32, #tpu.memory_space<smem>>, %arg2: memref<8x9xf32, #tpu.memory_space<vmem>>, %arg3: memref<9x256xf32, #tpu.memory_space<vmem>>, %arg4: memref<1x256xf32, #tpu.memory_space<vmem>>, %arg5: memref<256x256xbf16, #tpu.memory_space<vmem>>, %arg6: memref<1x256xf32, #tpu.memory_space<vmem>>, %arg7: memref<256x256xbf16, #tpu.memory_space<vmem>>, %arg8: memref<1x256xf32, #tpu.memory_space<vmem>>, %arg9: memref<256x128xbf16, #tpu.memory_space<vmem>>, %arg10: memref<1x128xf32, #tpu.memory_space<vmem>>, %arg11: memref<8x128xf32, #tpu.memory_space<vmem>>) attributes {dimension_semantics = [#tpu.dimension_semantics<parallel>], iteration_bounds = array<i64: 1>, scalar_prefetch = 0 : i64, scratch_operands = 0 : i64, tpu.core_type = #tpu.core_type<tc>, window_params = [{transform_indices = @transform_0, window_bounds = array<i64: 1, 3>}, {transform_indices = @transform_1, window_bounds = array<i64: 8, 9>}, {pipeline_mode = #tpu.pipeline_mode<synchronous>, transform_indices = @transform_2, window_bounds = array<i64: 9, 256>}, {pipeline_mode = #tpu.pipeline_mode<synchronous>, transform_indices = @transform_3, window_bounds = array<i64: 1, 256>}, {pipeline_mode = #tpu.pipeline_mode<synchronous>, transform_indices = @transform_4, window_bounds = array<i64: 256, 256>}, {pipeline_mode = #tpu.pipeline_mode<synchronous>, transform_indices = @transform_5, window_bounds = array<i64: 1, 256>}, {pipeline_mode = #tpu.pipeline_mode<synchronous>, transform_indices = @transform_6, window_bounds = array<i64: 256, 256>}, {pipeline_mode = #tpu.pipeline_mode<synchronous>, transform_indices = @transform_7, window_bounds = array<i64: 1, 256>}, {pipeline_mode = #tpu.pipeline_mode<synchronous>, transform_indices = @transform_8, window_bounds = array<i64: 256, 128>}, {pipeline_mode = #tpu.pipeline_mode<synchronous>, transform_indices = @transform_9, window_bounds = array<i64: 1, 128>}, {transform_indices = @transform_10, window_bounds = array<i64: 8, 128>}]} {
    %c0 = arith.constant 0 : index
    %c0_0 = arith.constant 0 : index
    %0 = vector.load %arg2[%c0, %c0_0] : memref<8x9xf32, #tpu.memory_space<vmem>>, vector<8x9xf32>
    %c0_1 = arith.constant 0 : index
    %c0_2 = arith.constant 0 : index
    %1 = vector.load %arg3[%c0_1, %c0_2] : memref<9x256xf32, #tpu.memory_space<vmem>>, vector<9x256xf32>
    %cst = arith.constant dense<0.000000e+00> : vector<8x256xf32>
    %2 = tpu.matmul %0, %1, %cst {dimension_numbers = #tpu.dot_dimension_numbers<[1], [0], [0], [1], [0, 0, 1, 1], [], []>} : vector<8x9xf32>, vector<9x256xf32>, vector<8x256xf32> -> vector<8x256xf32>
    %c0_3 = arith.constant 0 : index
    %c0_4 = arith.constant 0 : index
    %3 = vector.load %arg4[%c0_3, %c0_4] : memref<1x256xf32, #tpu.memory_space<vmem>>, vector<1x256xf32>
    %4 = vector.broadcast %3 : vector<1x256xf32> to vector<8x256xf32>
    %5 = arith.addf %2, %4 : vector<8x256xf32>
    %c0_5 = arith.constant 0 : index
    %c0_6 = arith.constant 0 : index
    %6 = memref.load %arg1[%c0_5, %c0_6] : memref<1x3xf32, #tpu.memory_space<smem>>
    %cst_7 = arith.constant 0.000000e+00 : f32
    %7 = vector.broadcast %cst_7 : f32 to vector<8x256xf32>
    %8 = arith.cmpf ogt, %5, %7 : vector<8x256xf32>
    %9 = vector.broadcast %6 : f32 to vector<8x256xf32>
    %10 = arith.mulf %9, %5 : vector<8x256xf32>
    %11 = arith.select %8, %5, %10 : vector<8x256xi1>, vector<8x256xf32>
    %12 = arith.truncf %11 : vector<8x256xf32> to vector<8x256xbf16>
    %c0_8 = arith.constant 0 : index
    %c0_9 = arith.constant 0 : index
    %13 = vector.load %arg5[%c0_8, %c0_9] : memref<256x256xbf16, #tpu.memory_space<vmem>>, vector<256x256xbf16>
    %cst_10 = arith.constant dense<0.000000e+00> : vector<8x256xf32>
    %14 = tpu.matmul %12, %13, %cst_10 {dimension_numbers = #tpu.dot_dimension_numbers<[1], [0], [0], [1], [0, 0, 1, 1], [], []>} : vector<8x256xbf16>, vector<256x256xbf16>, vector<8x256xf32> -> vector<8x256xf32>
    %c0_11 = arith.constant 0 : index
    %c0_12 = arith.constant 0 : index
    %15 = vector.load %arg6[%c0_11, %c0_12] : memref<1x256xf32, #tpu.memory_space<vmem>>, vector<1x256xf32>
    %16 = vector.broadcast %15 : vector<1x256xf32> to vector<8x256xf32>
    %17 = arith.addf %14, %16 : vector<8x256xf32>
    %c0_13 = arith.constant 0 : index
    %c1 = arith.constant 1 : index
    %18 = memref.load %arg1[%c0_13, %c1] : memref<1x3xf32, #tpu.memory_space<smem>>
    %cst_14 = arith.constant 0.000000e+00 : f32
    %19 = vector.broadcast %cst_14 : f32 to vector<8x256xf32>
    %20 = arith.cmpf ogt, %17, %19 : vector<8x256xf32>
    %21 = vector.broadcast %18 : f32 to vector<8x256xf32>
    %22 = arith.mulf %21, %17 : vector<8x256xf32>
    %23 = arith.select %20, %17, %22 : vector<8x256xi1>, vector<8x256xf32>
    %24 = arith.truncf %23 : vector<8x256xf32> to vector<8x256xbf16>
    %c0_15 = arith.constant 0 : index
    %c0_16 = arith.constant 0 : index
    %25 = vector.load %arg7[%c0_15, %c0_16] : memref<256x256xbf16, #tpu.memory_space<vmem>>, vector<256x256xbf16>
    %cst_17 = arith.constant dense<0.000000e+00> : vector<8x256xf32>
    %26 = tpu.matmul %24, %25, %cst_17 {dimension_numbers = #tpu.dot_dimension_numbers<[1], [0], [0], [1], [0, 0, 1, 1], [], []>} : vector<8x256xbf16>, vector<256x256xbf16>, vector<8x256xf32> -> vector<8x256xf32>
    %c0_18 = arith.constant 0 : index
    %c0_19 = arith.constant 0 : index
    %27 = vector.load %arg8[%c0_18, %c0_19] : memref<1x256xf32, #tpu.memory_space<vmem>>, vector<1x256xf32>
    %28 = vector.broadcast %27 : vector<1x256xf32> to vector<8x256xf32>
    %29 = arith.addf %26, %28 : vector<8x256xf32>
    %c0_20 = arith.constant 0 : index
    %c2 = arith.constant 2 : index
    %30 = memref.load %arg1[%c0_20, %c2] : memref<1x3xf32, #tpu.memory_space<smem>>
    %cst_21 = arith.constant 0.000000e+00 : f32
    %31 = vector.broadcast %cst_21 : f32 to vector<8x256xf32>
    %32 = arith.cmpf ogt, %29, %31 : vector<8x256xf32>
    %33 = vector.broadcast %30 : f32 to vector<8x256xf32>
    %34 = arith.mulf %33, %29 : vector<8x256xf32>
    %35 = arith.select %32, %29, %34 : vector<8x256xi1>, vector<8x256xf32>
    %36 = arith.truncf %35 : vector<8x256xf32> to vector<8x256xbf16>
    %c0_22 = arith.constant 0 : index
    %c0_23 = arith.constant 0 : index
    %37 = vector.load %arg9[%c0_22, %c0_23] : memref<256x128xbf16, #tpu.memory_space<vmem>>, vector<256x128xbf16>
    %cst_24 = arith.constant dense<0.000000e+00> : vector<8x128xf32>
    %38 = tpu.matmul %36, %37, %cst_24 {dimension_numbers = #tpu.dot_dimension_numbers<[1], [0], [0], [1], [0, 0, 1, 1], [], []>} : vector<8x256xbf16>, vector<256x128xbf16>, vector<8x128xf32> -> vector<8x128xf32>
    %c0_25 = arith.constant 0 : index
    %c0_26 = arith.constant 0 : index
    %39 = vector.load %arg10[%c0_25, %c0_26] : memref<1x128xf32, #tpu.memory_space<vmem>>, vector<1x128xf32>
    %40 = vector.broadcast %39 : vector<1x128xf32> to vector<8x128xf32>
    %41 = arith.addf %38, %40 : vector<8x128xf32>
    %c0_27 = arith.constant 0 : index
    %c0_28 = arith.constant 0 : index
    %42 = vector.load %arg11[%c0_27, %c0_28] : memref<8x128xf32, #tpu.memory_space<vmem>>, vector<8x128xf32>
    tpu.vector_store %arg11[%c0_27, %c0_28], %41 {strides = array<i32>} : memref<8x128xf32, #tpu.memory_space<vmem>>, vector<8x128xf32>,
    return
  }
  func.func @transform_0(%arg0: i32) -> (i32, i32) {
    %c0_i32 = arith.constant 0 : i32
    %c0_i32_0 = arith.constant 0 : i32
    %c0_i32_1 = arith.constant 0 : i32
    return %c0_i32, %c0_i32_0 : i32, i32
  }
  func.func @transform_1(%arg0: i32) -> (i32, i32) {
    %c0_i32 = arith.constant 0 : i32
    %c0_i32_0 = arith.constant 0 : i32
    return %arg0, %c0_i32 : i32, i32
  }
  func.func @transform_2(%arg0: i32) -> (i32, i32) {
    %c0_i32 = arith.constant 0 : i32
    %c0_i32_0 = arith.constant 0 : i32
    %c0_i32_1 = arith.constant 0 : i32
    return %c0_i32, %c0_i32_0 : i32, i32
  }
  func.func @transform_3(%arg0: i32) -> (i32, i32) {
    %c0_i32 = arith.constant 0 : i32
    %c0_i32_0 = arith.constant 0 : i32
    %c0_i32_1 = arith.constant 0 : i32
    return %c0_i32, %c0_i32_0 : i32, i32
  }
  func.func @transform_4(%arg0: i32) -> (i32, i32) {
    %c0_i32 = arith.constant 0 : i32
    %c0_i32_0 = arith.constant 0 : i32
    %c0_i32_1 = arith.constant 0 : i32
    return %c0_i32, %c0_i32_0 : i32, i32
  }
  func.func @transform_5(%arg0: i32) -> (i32, i32) {
    %c0_i32 = arith.constant 0 : i32
    %c0_i32_0 = arith.constant 0 : i32
    %c0_i32_1 = arith.constant 0 : i32
    return %c0_i32, %c0_i32_0 : i32, i32
  }
  func.func @transform_6(%arg0: i32) -> (i32, i32) {
    %c0_i32 = arith.constant 0 : i32
    %c0_i32_0 = arith.constant 0 : i32
    %c0_i32_1 = arith.constant 0 : i32
    return %c0_i32, %c0_i32_0 : i32, i32
  }
  func.func @transform_7(%arg0: i32) -> (i32, i32) {
    %c0_i32 = arith.constant 0 : i32
    %c0_i32_0 = arith.constant 0 : i32
    %c0_i32_1 = arith.constant 0 : i32
    return %c0_i32, %c0_i32_0 : i32, i32
  }
  func.func @transform_8(%arg0: i32) -> (i32, i32) {
    %c0_i32 = arith.constant 0 : i32
    %c0_i32_0 = arith.constant 0 : i32
    %c0_i32_1 = arith.constant 0 : i32
    return %c0_i32, %c0_i32_0 : i32, i32
  }
  func.func @transform_9(%arg0: i32) -> (i32, i32) {
    %c0_i32 = arith.constant 0 : i32
    %c0_i32_0 = arith.constant 0 : i32
    %c0_i32_1 = arith.constant 0 : i32
    return %c0_i32, %c0_i32_0 : i32, i32
  }
  func.func @transform_10(%arg0: i32) -> (i32, i32) {
    %c0_i32 = arith.constant 0 : i32
    %c0_i32_0 = arith.constant 0 : i32
    return %arg0, %c0_i32 : i32, i32
  }
}

</mosaic_0001>

<llo_original>
// kernel: actor_forward.1
$region0: #{actor_forward.1}
  #allocation0 [shape = 'u32[]', space=smem, size = 0x4, offset = 0x4, fixed_abs, tag = 'smem constant byte address 0x4 - core index']
  #allocation1 [shape = 'u32[144,128]{1,0:T(1,128)}', space=vmem, size = 0x12000, scoped, tag = 'internal scratch']
  %s0 = inlined_call_operand.vmem [shape: f32[1,3], index: 0, kind: input, shape index: {}]
  %s1 = inlined_call_operand.vmem [shape: f32[8,9], index: 1, kind: input, shape index: {}]
  %s2 = inlined_call_operand.vmem [shape: f32[9,256], index: 2, kind: input, shape index: {}]
  %s3 = inlined_call_operand.vmem [shape: f32[1,256], index: 3, kind: input, shape index: {}]
  %s4 = inlined_call_operand.hbm [shape: bf16[256,256], index: 4, kind: input, shape index: {}]
  %s5 = inlined_call_operand.vmem [shape: f32[1,256], index: 5, kind: input, shape index: {}]
  %s6 = inlined_call_operand.hbm [shape: bf16[256,256], index: 6, kind: input, shape index: {}]
  %s7 = inlined_call_operand.vmem [shape: f32[1,256], index: 7, kind: input, shape index: {}]
  %s8 = inlined_call_operand.hbm [shape: bf16[256,128], index: 8, kind: input, shape index: {}]
  %s9 = inlined_call_operand.vmem [shape: f32[1,128], index: 9, kind: input, shape index: {}]
  %s10 = inlined_call_operand.vmem [shape: f32[8,128], index: 10, kind: output, shape index: {}]
  %s11 = sld [smem:[#allocation0]]
  $region66: #{actor_forward.1} parent=0
    _
  %s13 = ssub.s32 1, %s11
  %s14 = scalar_select 0, %s13, %s11
  $region1: #{actor_forward.1} parent=0
    #allocation2 [shape = 'u8[512]{0}', space=smem, size = 0x200, scoped, tag = 'input window, operand 0, single buffered']
    #allocation3 [shape = 's32[1]{0}', space=sflag, size = 0x4, scoped, tag = 'scoped memory for actor_forward.1']
    #allocation4 [shape = 's32[1]{0}', space=sflag, size = 0x4, scoped, tag = 'scoped memory for actor_forward.1']
    #allocation5 [shape = 'u8[131072]{0}', space=vmem, size = 0x20000, scoped, tag = 'input window, operand 4, single buffered']
    #allocation6 [shape = 'u8[131072]{0}', space=vmem, size = 0x20000, scoped, tag = 'input window, operand 6, single buffered']
    #allocation7 [shape = 's32[1]{0}', space=sflag, size = 0x4, scoped, tag = 'scoped memory for actor_forward.1']
    #allocation8 [shape = 'u8[65536]{0}', space=vmem, size = 0x10000, scoped, tag = 'input window, operand 8, single buffered']
    %15 = vsyncpa [#allocation4], 0
    %16 = vsyncpa [#allocation3], 0
    %17 = vsyncpa [#allocation7], 0
    // Predicated region
    $region2: #{actor_forward.1} parent=1 // pred_check
      _
    $region3: #{actor_forward.1} parent=1 // pred_check_branch
      %19 = sbr.rel (0) target = $region5
    $region4: #{actor_forward.1} parent=1 // pred_region
      %s21 = ssub.s32 16, 16
      %22 = vsyncadd [#allocation4], %s21
      %s24 = sshll.u32 %s0, 4
      %s25 = int_to_ptr.vmem [resolvable:$true] %s24
      %27 = dma.vmem_to_smem %s25, 16, [#allocation2], [#allocation4]
    $region5: #{actor_forward.1} parent=1 // pred_fallthru
      _
    // Predicated region
    $region6: #{actor_forward.1} parent=1 // pred_check
      _
    $region7: #{actor_forward.1} parent=1 // pred_check_branch
      %29 = sbr.rel (0) target = $region9
    $region8: #{actor_forward.1} parent=1 // pred_region
      _
    $region9: #{actor_forward.1} parent=1 // pred_fallthru
      _
    // Predicated region
    $region10: #{actor_forward.1} parent=1 // pred_check
      _
    $region11: #{actor_forward.1} parent=1 // pred_check_branch
      %31 = sbr.rel (0) target = $region13
    $region12: #{actor_forward.1} parent=1 // pred_region
      _
    $region13: #{actor_forward.1} parent=1 // pred_fallthru
      _
    // Predicated region
    $region14: #{actor_forward.1} parent=1 // pred_check
      _
    $region15: #{actor_forward.1} parent=1 // pred_check_branch
      %33 = sbr.rel (0) target = $region17
    $region16: #{actor_forward.1} parent=1 // pred_region
      _
    $region17: #{actor_forward.1} parent=1 // pred_fallthru
      _
    // Predicated region
    $region18: #{actor_forward.1} parent=1 // pred_check
      _
    $region19: #{actor_forward.1} parent=1 // pred_check_branch
      %35 = sbr.rel (0) target = $region21
    $region20: #{actor_forward.1} parent=1 // pred_region
      %s37 = ssub.s32 4096, 4096
      %38 = vsyncadd [#allocation3], %s37
      %s39 = sshll.u32 [#allocation5], 4
      %s40 = int_to_ptr.vmem [resolvable:$true] %s39
      %45 = dma.hbm_to_vmem [thread:$0]  %s4, 4096, %s40, [#allocation3], 128, 128, 8
    $region21: #{actor_forward.1} parent=1 // pred_fallthru
      _
    // Predicated region
    $region22: #{actor_forward.1} parent=1 // pred_check
      _
    $region23: #{actor_forward.1} parent=1 // pred_check_branch
      %47 = sbr.rel (0) target = $region25
    $region24: #{actor_forward.1} parent=1 // pred_region
      _
    $region25: #{actor_forward.1} parent=1 // pred_fallthru
      _
    // Predicated region
    $region26: #{actor_forward.1} parent=1 // pred_check
      _
    $region27: #{actor_forward.1} parent=1 // pred_check_branch
      %49 = sbr.rel (0) target = $region29
    $region28: #{actor_forward.1} parent=1 // pred_region
      %s51 = ssub.s32 4096, 4096
      %52 = vsyncadd [#allocation7], %s51
      %s53 = sshll.u32 [#allocation6], 4
      %s54 = int_to_ptr.vmem [resolvable:$true] %s53
      %59 = dma.hbm_to_vmem [thread:$0]  %s6, 4096, %s54, [#allocation7], 128, 128, 8
    $region29: #{actor_forward.1} parent=1 // pred_fallthru
      _
    // Predicated region
    $region30: #{actor_forward.1} parent=1 // pred_check
      _
    $region31: #{actor_forward.1} parent=1 // pred_check_branch
      %61 = sbr.rel (0) target = $region33
    $region32: #{actor_forward.1} parent=1 // pred_region
      _
    $region33: #{actor_forward.1} parent=1 // pred_fallthru
      _
    // Predicated region
    $region34: #{actor_forward.1} parent=1 // pred_check
      _
    $region35: #{actor_forward.1} parent=1 // pred_check_branch
      %63 = sbr.rel (0) target = $region37
    $region36: #{actor_forward.1} parent=1 // pred_region
      %s65 = ssub.s32 2048, 2048
      %66 = vsyncadd [#allocation7], %s65
      %s67 = sshll.u32 [#allocation8], 4
      %s68 = int_to_ptr.vmem [resolvable:$true] %s67
      %73 = dma.hbm_to_vmem [thread:$0]  %s8, 2048, %s68, [#allocation7], 64, 64, 4
    $region37: #{actor_forward.1} parent=1 // pred_fallthru
      _
    // Predicated region
    $region38: #{actor_forward.1} parent=1 // pred_check
      _
    $region39: #{actor_forward.1} parent=1 // pred_check_branch
      %75 = sbr.rel (0) target = $region41
    $region40: #{actor_forward.1} parent=1 // pred_region
      _
    $region41: #{actor_forward.1} parent=1 // pred_fallthru
      _
    // Predicated region
    $region42: #{actor_forward.1} parent=1 // pred_check
      _
    $region43: #{actor_forward.1} parent=1 // pred_check_branch
      %77 = sbr.rel (0) target = $region45
    $region44: #{actor_forward.1} parent=1 // pred_region
      %78 = dma.done [#allocation4], 16
    $region45: #{actor_forward.1} parent=1 // pred_fallthru
      _
    // Predicated region
    $region46: #{actor_forward.1} parent=1 // pred_check
      _
    $region47: #{actor_forward.1} parent=1 // pred_check_branch
      %80 = sbr.rel (0) target = $region49
    $region48: #{actor_forward.1} parent=1 // pred_region
      %81 = dma.done [#allocation3], 4096
    $region49: #{actor_forward.1} parent=1 // pred_fallthru
      _
    // Predicated region
    $region50: #{actor_forward.1} parent=1 // pred_check
      _
    $region51: #{actor_forward.1} parent=1 // pred_check_branch
      %83 = sbr.rel (0) target = $region53
    $region52: #{actor_forward.1} parent=1 // pred_region
      %84 = dma.done [#allocation7], 4096
    $region53: #{actor_forward.1} parent=1 // pred_fallthru
      _
    // Predicated region
    $region54: #{actor_forward.1} parent=1 // pred_check
      _
    $region55: #{actor_forward.1} parent=1 // pred_check_branch
      %86 = sbr.rel (0) target = $region57
    $region56: #{actor_forward.1} parent=1 // pred_region
      %87 = dma.done [#allocation7], 2048
    $region57: #{actor_forward.1} parent=1 // pred_fallthru
      _
    %88 = sfence
    %v90 = vld [vmem:[%s1] sm:$0xff]
    %v91 = vld [vmem:[%s2] sm:$0xff]
    %v92 = vld [vmem:[%s2 + $0x8] sm:$0xff]
    %v93 = vld [vmem:[%s2 + $0x10] sm:$0x1]
    %v94 = vld [vmem:[%s2 + $0x18] sm:$0x1]
    %v95 = vld [vmem:[%s3] sm:$0x3]
    %v97 = vlaneseq
    %v98 = vshrl.u32 %v97, 7
    %v99 = vsub.s32 0, %v98
    %v100 = vrot.slane %v95, %v99
    %v101 = vlaneseq
    %v102 = vshrl.u32 %v101, 7
    %v103 = vsub.s32 1, %v102
    %v104 = vrot.slane %v95, %v103
    %vm107 = vcmask 72704
    %v109 = vsel %vm107, %v90, 0
    %vm111 = vcmask 1040384
    %v113 = vsel %vm111, %v93, 0
    %v116 = vsel %vm111, %v94, 0
    %118 = vmatprep.subr.mxu0 %v92
    %119 = vmatpush1.msra.mxu0 %v91
    %120 = vmatprep.subr.mxu0 %v116
    %121 = vmatpush1.msra.mxu0 %v113
    %122 = vmatprep.subr.mxu0 0.0
    %123 = vmatpush1.msra.mxu0 0.0
    %124 = vmatprep.subr.mxu0 0.0
    %125 = vmatpush1.msra.mxu0 0.0
    %126 = vmatprep.subr.mxu0 0.0
    %127 = vmatpush1.msra.mxu0 0.0
    %128 = vmatprep.subr.mxu0 0.0
    %129 = vmatpush1.msra.mxu0 0.0
    %130 = vmatprep.subr.mxu0 0.0
    %131 = vmatpush1.msra.mxu0 0.0
    %132 = vmatprep.subr.mxu0 0.0
    %133 = vmatpush1.msra.mxu0 0.0
    %134 = vmatprep.subr.mxu0 0.0
    %135 = vmatpush1.msra.mxu0 0.0
    %136 = vmatprep.subr.mxu0 0.0
    %137 = vmatpush1.msra.mxu0 0.0
    %138 = vmatprep.subr.mxu0 0.0
    %139 = vmatpush1.msra.mxu0 0.0
    %140 = vmatprep.subr.mxu0 0.0
    %141 = vmatpush1.msra.mxu0 0.0
    %142 = vmatprep.subr.mxu0 0.0
    %143 = vmatpush1.msra.mxu0 0.0
    %144 = vmatprep.subr.mxu0 0.0
    %145 = vmatpush1.msra.mxu0 0.0
    %146 = vmatprep.subr.mxu0 0.0
    %147 = vmatpush1.msra.mxu0 0.0
    %148 = vmatprep.subr.mxu0 0.0
    %149 = vmatpush1.msra.mxu0 0.0
    %150 = vmatprep.subr.mxu0 0.0
    %151 = vmatpush1.msra.mxu0 0.0
    %152 = vmatprep.subr.mxu0 0.0
    %153 = vmatpush1.msra.mxu0 0.0
    %154 = vmatprep.subr.mxu0 0.0
    %155 = vmatpush1.msra.mxu0 0.0
    %156 = vmatprep.subr.mxu0 0.0
    %157 = vmatpush1.msra.mxu0 0.0
    %158 = vmatprep.subr.mxu0 0.0
    %159 = vmatpush1.msra.mxu0 0.0
    %160 = vmatprep.subr.mxu0 0.0
    %161 = vmatpush1.msra.mxu0 0.0
    %162 = vmatprep.subr.mxu0 0.0
    %163 = vmatpush1.msra.mxu0 0.0
    %164 = vmatprep.subr.mxu0 0.0
    %165 = vmatpush1.msra.mxu0 0.0
    %166 = vmatprep.subr.mxu0 0.0
    %167 = vmatpush1.msra.mxu0 0.0
    %168 = vmatprep.subr.mxu0 0.0
    %169 = vmatpush1.msra.mxu0 0.0
    %170 = vmatprep.subr.mxu0 0.0
    %171 = vmatpush1.msra.mxu0 0.0
    %172 = vmatprep.subr.mxu0 0.0
    %173 = vmatpush1.msra.mxu0 0.0
    %174 = vmatprep.subr.mxu0 0.0
    %175 = vmatpush1.msra.mxu0 0.0
    %176 = vmatprep.subr.mxu0 0.0
    %177 = vmatpush1.msra.mxu0 0.0
    %178 = vmatprep.subr.mxu0 0.0
    %179 = vmatpush1.msra.mxu0 0.0
    %180 = vmatprep.subr.mxu0 0.0
    %181 = vmatpush1.msra.mxu0 0.0
    %182 = vmatprep.mubr.f32.mxu0 0.0
    %183 = vmatmul.mubr.f32.gmra.mrb[0].mxu0 %v109
    %v184 = vpop.f32.mrb[0].mxu0
    %v185 = vadd.f32 %v100, %v184
    %v186 = vpop.f32.mrb[0].mxu0
    %v187 = vadd.f32 %v104, %v186
    %188 = vdwg.mxu0
    %s189 = sld [smem:[#allocation2]]
    %vm190 = vcmp.gt.f32.partialorder %v185, 0.0
    %vm191 = vcmp.gt.f32.partialorder %v187, 0.0
    %v192 = vstv %s189
    %v193 = vmul.f32 %v192, %v185
    %v194 = vmul.f32 %v192, %v187
    %v195 = vsel %vm190, %v185, %v193
    %v196 = vsel %vm191, %v187, %v194
    %v197 = vpack.c.bf16 %v195, %v195
    %v198 = vpack.c.bf16 %v196, %v196
    %v199 = vld [vmem:[#allocation5] sm:$0xff]
    %v200 = vld [vmem:[#allocation5 + $0x8] sm:$0xff]
    %v201 = vld [vmem:[#allocation5 + $0x10] sm:$0xff]
    %v202 = vld [vmem:[#allocation5 + $0x18] sm:$0xff]
    %v203 = vld [vmem:[#allocation5 + $0x20] sm:$0xff]
    %v204 = vld [vmem:[#allocation5 + $0x28] sm:$0xff]
    %v205 = vld [vmem:[#allocation5 + $0x30] sm:$0xff]
    %v206 = vld [vmem:[#allocation5 + $0x38] sm:$0xff]
    %v207 = vld [vmem:[#allocation5 + $0x40] sm:$0xff]
    %v208 = vld [vmem:[#allocation5 + $0x48] sm:$0xff]
    %v209 = vld [vmem:[#allocation5 + $0x50] sm:$0xff]
    %v210 = vld [vmem:[#allocation5 + $0x58] sm:$0xff]
    %v211 = vld [vmem:[#allocation5 + $0x60] sm:$0xff]
    %v212 = vld [vmem:[#allocation5 + $0x68] sm:$0xff]
    %v213 = vld [vmem:[#allocation5 + $0x70] sm:$0xff]
    %v214 = vld [vmem:[#allocation5 + $0x78] sm:$0xff]
    %v215 = vld [vmem:[#allocation5 + $0x80] sm:$0xff]
    %v216 = vld [vmem:[#allocation5 + $0x88] sm:$0xff]
    %v217 = vld [vmem:[#allocation5 + $0x90] sm:$0xff]
    %v218 = vld [vmem:[#allocation5 + $0x98] sm:$0xff]
    %v219 = vld [vmem:[#allocation5 + $0xa0] sm:$0xff]
    %v220 = vld [vmem:[#allocation5 + $0xa8] sm:$0xff]
    %v221 = vld [vmem:[#allocation5 + $0xb0] sm:$0xff]
    %v222 = vld [vmem:[#allocation5 + $0xb8] sm:$0xff]
    %v223 = vld [vmem:[#allocation5 + $0xc0] sm:$0xff]
    %v224 = vld [vmem:[#allocation5 + $0xc8] sm:$0xff]
    %v225 = vld [vmem:[#allocation5 + $0xd0] sm:$0xff]
    %v226 = vld [vmem:[#allocation5 + $0xd8] sm:$0xff]
    %v227 = vld [vmem:[#allocation5 + $0xe0] sm:$0xff]
    %v228 = vld [vmem:[#allocation5 + $0xe8] sm:$0xff]
    %v229 = vld [vmem:[#allocation5 + $0xf0] sm:$0xff]
    %v230 = vld [vmem:[#allocation5 + $0xf8] sm:$0xff]
    %v231 = vld [vmem:[%s5] sm:$0x3]
    %v233 = vlaneseq
    %v234 = vshrl.u32 %v233, 7
    %v235 = vsub.s32 0, %v234
    %v236 = vrot.slane %v231, %v235
    %v237 = vlaneseq
    %v238 = vshrl.u32 %v237, 7
    %v239 = vsub.s32 1, %v238
    %v240 = vrot.slane %v231, %v239
    %v275 = vunpack.c.l.b16 %v199
    %v276 = vunpack.c.h.b16 %v199
    %v277 = vunpack.c.l.b16 %v200
    %v278 = vunpack.c.h.b16 %v200
    %v279 = vunpack.c.l.b16 %v201
    %v280 = vunpack.c.h.b16 %v201
    %v281 = vunpack.c.l.b16 %v202
    %v282 = vunpack.c.h.b16 %v202
    %v283 = vunpack.c.l.b16 %v203
    %v284 = vunpack.c.h.b16 %v203
    %v285 = vunpack.c.l.b16 %v204
    %v286 = vunpack.c.h.b16 %v204
    %v287 = vunpack.c.l.b16 %v205
    %v288 = vunpack.c.h.b16 %v205
    %v289 = vunpack.c.l.b16 %v206
    %v290 = vunpack.c.h.b16 %v206
    %v291 = vunpack.c.l.b16 %v207
    %v292 = vunpack.c.h.b16 %v207
    %v293 = vunpack.c.l.b16 %v208
    %v294 = vunpack.c.h.b16 %v208
    %v295 = vunpack.c.l.b16 %v209
    %v296 = vunpack.c.h.b16 %v209
    %v297 = vunpack.c.l.b16 %v210
    %v298 = vunpack.c.h.b16 %v210
    %v299 = vunpack.c.l.b16 %v211
    %v300 = vunpack.c.h.b16 %v211
    %v301 = vunpack.c.l.b16 %v212
    %v302 = vunpack.c.h.b16 %v212
    %v303 = vunpack.c.l.b16 %v213
    %v304 = vunpack.c.h.b16 %v213
    %v305 = vunpack.c.l.b16 %v214
    %v306 = vunpack.c.h.b16 %v214
    %v307 = vunpack.c.l.b16 %v215
    %v308 = vunpack.c.h.b16 %v215
    %v309 = vunpack.c.l.b16 %v216
    %v310 = vunpack.c.h.b16 %v216
    %v311 = vunpack.c.l.b16 %v217
    %v312 = vunpack.c.h.b16 %v217
    %v313 = vunpack.c.l.b16 %v218
    %v314 = vunpack.c.h.b16 %v218
    %v315 = vunpack.c.l.b16 %v219
    %v316 = vunpack.c.h.b16 %v219
    %v317 = vunpack.c.l.b16 %v220
    %v318 = vunpack.c.h.b16 %v220
    %v319 = vunpack.c.l.b16 %v221
    %v320 = vunpack.c.h.b16 %v221
    %v321 = vunpack.c.l.b16 %v222
    %v322 = vunpack.c.h.b16 %v222
    %v323 = vunpack.c.l.b16 %v223
    %v324 = vunpack.c.h.b16 %v223
    %v325 = vunpack.c.l.b16 %v224
    %v326 = vunpack.c.h.b16 %v224
    %v327 = vunpack.c.l.b16 %v225
    %v328 = vunpack.c.h.b16 %v225
    %v329 = vunpack.c.l.b16 %v226
    %v330 = vunpack.c.h.b16 %v226
    %v331 = vunpack.c.l.b16 %v227
    %v332 = vunpack.c.h.b16 %v227
    %v333 = vunpack.c.l.b16 %v228
    %v334 = vunpack.c.h.b16 %v228
    %v335 = vunpack.c.l.b16 %v229
    %v336 = vunpack.c.h.b16 %v229
    %v337 = vunpack.c.l.b16 %v230
    %v338 = vunpack.c.h.b16 %v230
    %v339 = vpack.c.b16 %v277, %v275
    %v340 = vpack.c.b16 %v278, %v276
    %v341 = vpack.c.b16 %v281, %v279
    %v342 = vpack.c.b16 %v282, %v280
    %v343 = vpack.c.b16 %v285, %v283
    %v344 = vpack.c.b16 %v286, %v284
    %v345 = vpack.c.b16 %v289, %v287
    %v346 = vpack.c.b16 %v290, %v288
    %v347 = vpack.c.b16 %v293, %v291
    %v348 = vpack.c.b16 %v294, %v292
    %v349 = vpack.c.b16 %v297, %v295
    %v350 = vpack.c.b16 %v298, %v296
    %v351 = vpack.c.b16 %v301, %v299
    %v352 = vpack.c.b16 %v302, %v300
    %v353 = vpack.c.b16 %v305, %v303
    %v354 = vpack.c.b16 %v306, %v304
    %v355 = vpack.c.b16 %v309, %v307
    %v356 = vpack.c.b16 %v310, %v308
    %v357 = vpack.c.b16 %v313, %v311
    %v358 = vpack.c.b16 %v314, %v312
    %v359 = vpack.c.b16 %v317, %v315
    %v360 = vpack.c.b16 %v318, %v316
    %v361 = vpack.c.b16 %v321, %v319
    %v362 = vpack.c.b16 %v322, %v320
    %v363 = vpack.c.b16 %v325, %v323
    %v364 = vpack.c.b16 %v326, %v324
    %v365 = vpack.c.b16 %v329, %v327
    %v366 = vpack.c.b16 %v330, %v328
    %v367 = vpack.c.b16 %v333, %v331
    %v368 = vpack.c.b16 %v334, %v332
    %v369 = vpack.c.b16 %v337, %v335
    %v370 = vpack.c.b16 %v338, %v336
    %403 = vmatprep.subr.bf16.mxu0 %v340
    %404 = vmatpush1.bf16.msra.mxu0 %v339
    %405 = vmatprep.subr.bf16.mxu0 %v342
    %406 = vmatpush1.bf16.msra.mxu0 %v341
    %407 = vmatprep.subr.bf16.mxu0 %v344
    %408 = vmatpush1.bf16.msra.mxu0 %v343
    %409 = vmatprep.subr.bf16.mxu0 %v346
    %410 = vmatpush1.bf16.msra.mxu0 %v345
    %411 = vmatprep.subr.bf16.mxu0 %v348
    %412 = vmatpush1.bf16.msra.mxu0 %v347
    %413 = vmatprep.subr.bf16.mxu0 %v350
    %414 = vmatpush1.bf16.msra.mxu0 %v349
    %415 = vmatprep.subr.bf16.mxu0 %v352
    %416 = vmatpush1.bf16.msra.mxu0 %v351
    %417 = vmatprep.subr.bf16.mxu0 %v354
    %418 = vmatpush1.bf16.msra.mxu0 %v353
    %419 = vmatprep.subr.bf16.mxu0 %v356
    %420 = vmatpush1.bf16.msra.mxu0 %v355
    %421 = vmatprep.subr.bf16.mxu0 %v358
    %422 = vmatpush1.bf16.msra.mxu0 %v357
    %423 = vmatprep.subr.bf16.mxu0 %v360
    %424 = vmatpush1.bf16.msra.mxu0 %v359
    %425 = vmatprep.subr.bf16.mxu0 %v362
    %426 = vmatpush1.bf16.msra.mxu0 %v361
    %427 = vmatprep.subr.bf16.mxu0 %v364
    %428 = vmatpush1.bf16.msra.mxu0 %v363
    %429 = vmatprep.subr.bf16.mxu0 %v366
    %430 = vmatpush1.bf16.msra.mxu0 %v365
    %431 = vmatprep.subr.bf16.mxu0 %v368
    %432 = vmatpush1.bf16.msra.mxu0 %v367
    %433 = vmatprep.subr.bf16.mxu0 %v370
    %434 = vmatpush1.bf16.msra.mxu0 %v369
    %435 = vmatprep.mubr.bf16.mxu0 %v198
    %436 = vmatmul.mubr.bf16.gmra.mrb[0].mxu0 %v197
    %v437 = vpop.f32.mrb[0].mxu0
    %v438 = vadd.f32 %v236, %v437
    %v439 = vpop.f32.mrb[0].mxu0
    %v440 = vadd.f32 %v240, %v439
    %v441 = vpop.f32.mrb[0].mxu0
    %v442 = vpop.f32.mrb[0].mxu0
    %443 = vdwg.mxu0
    %s444 = sld [smem:[#allocation2 + $0x1]]
    %vm445 = vcmp.gt.f32.partialorder %v438, 0.0
    %vm446 = vcmp.gt.f32.partialorder %v440, 0.0
    %v447 = vstv %s444
    %v448 = vmul.f32 %v447, %v438
    %v449 = vmul.f32 %v447, %v440
    %v450 = vsel %vm445, %v438, %v448
    %v451 = vsel %vm446, %v440, %v449
    %v452 = vpack.c.bf16 %v450, %v450
    %v453 = vpack.c.bf16 %v451, %v451
    %v454 = vld [vmem:[#allocation6] sm:$0xff]
    %v455 = vld [vmem:[#allocation6 + $0x8] sm:$0xff]
    %v456 = vld [vmem:[#allocation6 + $0x10] sm:$0xff]
    %v457 = vld [vmem:[#allocation6 + $0x18] sm:$0xff]
    %v458 = vld [vmem:[#allocation6 + $0x20] sm:$0xff]
    %v459 = vld [vmem:[#allocation6 + $0x28] sm:$0xff]
    %v460 = vld [vmem:[#allocation6 + $0x30] sm:$0xff]
    %v461 = vld [vmem:[#allocation6 + $0x38] sm:$0xff]
    %v462 = vld [vmem:[#allocation6 + $0x40] sm:$0xff]
    %v463 = vld [vmem:[#allocation6 + $0x48] sm:$0xff]
    %v464 = vld [vmem:[#allocation6 + $0x50] sm:$0xff]
    %v465 = vld [vmem:[#allocation6 + $0x58] sm:$0xff]
    %v466 = vld [vmem:[#allocation6 + $0x60] sm:$0xff]
    %v467 = vld [vmem:[#allocation6 + $0x68] sm:$0xff]
    %v468 = vld [vmem:[#allocation6 + $0x70] sm:$0xff]
    %v469 = vld [vmem:[#allocation6 + $0x78] sm:$0xff]
    %v470 = vld [vmem:[#allocation6 + $0x80] sm:$0xff]
    %v471 = vld [vmem:[#allocation6 + $0x88] sm:$0xff]
    %v472 = vld [vmem:[#allocation6 + $0x90] sm:$0xff]
    %v473 = vld [vmem:[#allocation6 + $0x98] sm:$0xff]
    %v474 = vld [vmem:[#allocation6 + $0xa0] sm:$0xff]
    %v475 = vld [vmem:[#allocation6 + $0xa8] sm:$0xff]
    %v476 = vld [vmem:[#allocation6 + $0xb0] sm:$0xff]
    %v477 = vld [vmem:[#allocation6 + $0xb8] sm:$0xff]
    %v478 = vld [vmem:[#allocation6 + $0xc0] sm:$0xff]
    %v479 = vld [vmem:[#allocation6 + $0xc8] sm:$0xff]
    %v480 = vld [vmem:[#allocation6 + $0xd0] sm:$0xff]
    %v481 = vld [vmem:[#allocation6 + $0xd8] sm:$0xff]
    %v482 = vld [vmem:[#allocation6 + $0xe0] sm:$0xff]
    %v483 = vld [vmem:[#allocation6 + $0xe8] sm:$0xff]
    %v484 = vld [vmem:[#allocation6 + $0xf0] sm:$0xff]
    %v485 = vld [vmem:[#allocation6 + $0xf8] sm:$0xff]
    %v486 = vld [vmem:[%s7] sm:$0x3]
    %v488 = vlaneseq
    %v489 = vshrl.u32 %v488, 7
    %v490 = vsub.s32 0, %v489
    %v491 = vrot.slane %v486, %v490
    %v492 = vlaneseq
    %v493 = vshrl.u32 %v492, 7
    %v494 = vsub.s32 1, %v493
    %v495 = vrot.slane %v486, %v494
    %v530 = vunpack.c.l.b16 %v454
    %v531 = vunpack.c.h.b16 %v454
    %v532 = vunpack.c.l.b16 %v455
    %v533 = vunpack.c.h.b16 %v455
    %v534 = vunpack.c.l.b16 %v456
    %v535 = vunpack.c.h.b16 %v456
    %v536 = vunpack.c.l.b16 %v457
    %v537 = vunpack.c.h.b16 %v457
    %v538 = vunpack.c.l.b16 %v458
    %v539 = vunpack.c.h.b16 %v458
    %v540 = vunpack.c.l.b16 %v459
    %v541 = vunpack.c.h.b16 %v459
    %v542 = vunpack.c.l.b16 %v460
    %v543 = vunpack.c.h.b16 %v460
    %v544 = vunpack.c.l.b16 %v461
    %v545 = vunpack.c.h.b16 %v461
    %v546 = vunpack.c.l.b16 %v462
    %v547 = vunpack.c.h.b16 %v462
    %v548 = vunpack.c.l.b16 %v463
    %v549 = vunpack.c.h.b16 %v463
    %v550 = vunpack.c.l.b16 %v464
    %v551 = vunpack.c.h.b16 %v464
    %v552 = vunpack.c.l.b16 %v465
    %v553 = vunpack.c.h.b16 %v465
    %v554 = vunpack.c.l.b16 %v466
    %v555 = vunpack.c.h.b16 %v466
    %v556 = vunpack.c.l.b16 %v467
    %v557 = vunpack.c.h.b16 %v467
    %v558 = vunpack.c.l.b16 %v468
    %v559 = vunpack.c.h.b16 %v468
    %v560 = vunpack.c.l.b16 %v469
    %v561 = vunpack.c.h.b16 %v469
    %v562 = vunpack.c.l.b16 %v470
    %v563 = vunpack.c.h.b16 %v470
    %v564 = vunpack.c.l.b16 %v471
    %v565 = vunpack.c.h.b16 %v471
    %v566 = vunpack.c.l.b16 %v472
    %v567 = vunpack.c.h.b16 %v472
    %v568 = vunpack.c.l.b16 %v473
    %v569 = vunpack.c.h.b16 %v473
    %v570 = vunpack.c.l.b16 %v474
    %v571 = vunpack.c.h.b16 %v474
    %v572 = vunpack.c.l.b16 %v475
    %v573 = vunpack.c.h.b16 %v475
    %v574 = vunpack.c.l.b16 %v476
    %v575 = vunpack.c.h.b16 %v476
    %v576 = vunpack.c.l.b16 %v477
    %v577 = vunpack.c.h.b16 %v477
    %v578 = vunpack.c.l.b16 %v478
    %v579 = vunpack.c.h.b16 %v478
    %v580 = vunpack.c.l.b16 %v479
    %v581 = vunpack.c.h.b16 %v479
    %v582 = vunpack.c.l.b16 %v480
    %v583 = vunpack.c.h.b16 %v480
    %v584 = vunpack.c.l.b16 %v481
    %v585 = vunpack.c.h.b16 %v481
    %v586 = vunpack.c.l.b16 %v482
    %v587 = vunpack.c.h.b16 %v482
    %v588 = vunpack.c.l.b16 %v483
    %v589 = vunpack.c.h.b16 %v483
    %v590 = vunpack.c.l.b16 %v484
    %v591 = vunpack.c.h.b16 %v484
    %v592 = vunpack.c.l.b16 %v485
    %v593 = vunpack.c.h.b16 %v485
    %v594 = vpack.c.b16 %v532, %v530
    %v595 = vpack.c.b16 %v533, %v531
    %v596 = vpack.c.b16 %v536, %v534
    %v597 = vpack.c.b16 %v537, %v535
    %v598 = vpack.c.b16 %v540, %v538
    %v599 = vpack.c.b16 %v541, %v539
    %v600 = vpack.c.b16 %v544, %v542
    %v601 = vpack.c.b16 %v545, %v543
    %v602 = vpack.c.b16 %v548, %v546
    %v603 = vpack.c.b16 %v549, %v547
    %v604 = vpack.c.b16 %v552, %v550
    %v605 = vpack.c.b16 %v553, %v551
    %v606 = vpack.c.b16 %v556, %v554
    %v607 = vpack.c.b16 %v557, %v555
    %v608 = vpack.c.b16 %v560, %v558
    %v609 = vpack.c.b16 %v561, %v559
    %v610 = vpack.c.b16 %v564, %v562
    %v611 = vpack.c.b16 %v565, %v563
    %v612 = vpack.c.b16 %v568, %v566
    %v613 = vpack.c.b16 %v569, %v567
    %v614 = vpack.c.b16 %v572, %v570
    %v615 = vpack.c.b16 %v573, %v571
    %v616 = vpack.c.b16 %v576, %v574
    %v617 = vpack.c.b16 %v577, %v575
    %v618 = vpack.c.b16 %v580, %v578
    %v619 = vpack.c.b16 %v581, %v579
    %v620 = vpack.c.b16 %v584, %v582
    %v621 = vpack.c.b16 %v585, %v583
    %v622 = vpack.c.b16 %v588, %v586
    %v623 = vpack.c.b16 %v589, %v587
    %v624 = vpack.c.b16 %v592, %v590
    %v625 = vpack.c.b16 %v593, %v591
    %658 = vmatprep.subr.bf16.mxu0 %v595
    %659 = vmatpush1.bf16.msra.mxu0 %v594
    %660 = vmatprep.subr.bf16.mxu0 %v597
    %661 = vmatpush1.bf16.msra.mxu0 %v596
    %662 = vmatprep.subr.bf16.mxu0 %v599
    %663 = vmatpush1.bf16.msra.mxu0 %v598
    %664 = vmatprep.subr.bf16.mxu0 %v601
    %665 = vmatpush1.bf16.msra.mxu0 %v600
    %666 = vmatprep.subr.bf16.mxu0 %v603
    %667 = vmatpush1.bf16.msra.mxu0 %v602
    %668 = vmatprep.subr.bf16.mxu0 %v605
    %669 = vmatpush1.bf16.msra.mxu0 %v604
    %670 = vmatprep.subr.bf16.mxu0 %v607
    %671 = vmatpush1.bf16.msra.mxu0 %v606
    %672 = vmatprep.subr.bf16.mxu0 %v609
    %673 = vmatpush1.bf16.msra.mxu0 %v608
    %674 = vmatprep.subr.bf16.mxu0 %v611
    %675 = vmatpush1.bf16.msra.mxu0 %v610
    %676 = vmatprep.subr.bf16.mxu0 %v613
    %677 = vmatpush1.bf16.msra.mxu0 %v612
    %678 = vmatprep.subr.bf16.mxu0 %v615
    %679 = vmatpush1.bf16.msra.mxu0 %v614
    %680 = vmatprep.subr.bf16.mxu0 %v617
    %681 = vmatpush1.bf16.msra.mxu0 %v616
    %682 = vmatprep.subr.bf16.mxu0 %v619
    %683 = vmatpush1.bf16.msra.mxu0 %v618
    %684 = vmatprep.subr.bf16.mxu0 %v621
    %685 = vmatpush1.bf16.msra.mxu0 %v620
    %686 = vmatprep.subr.bf16.mxu0 %v623
    %687 = vmatpush1.bf16.msra.mxu0 %v622
    %688 = vmatprep.subr.bf16.mxu0 %v625
    %689 = vmatpush1.bf16.msra.mxu0 %v624
    %690 = vmatprep.mubr.bf16.mxu0 %v453
    %691 = vmatmul.mubr.bf16.gmra.mrb[0].mxu0 %v452
    %v692 = vpop.f32.mrb[0].mxu0
    %v693 = vadd.f32 %v491, %v692
    %v694 = vpop.f32.mrb[0].mxu0
    %v695 = vadd.f32 %v495, %v694
    %v696 = vpop.f32.mrb[0].mxu0
    %v697 = vpop.f32.mrb[0].mxu0
    %698 = vdwg.mxu0
    %s699 = sld [smem:[#allocation2 + $0x2]]
    %vm700 = vcmp.gt.f32.partialorder %v693, 0.0
    %vm701 = vcmp.gt.f32.partialorder %v695, 0.0
    %v702 = vstv %s699
    %v703 = vmul.f32 %v702, %v693
    %v704 = vmul.f32 %v702, %v695
    %v705 = vsel %vm700, %v693, %v703
    %v706 = vsel %vm701, %v695, %v704
    %v707 = vpack.c.bf16 %v705, %v705
    %v708 = vpack.c.bf16 %v706, %v706
    %v709 = vld [vmem:[#allocation8] sm:$0xf]
    %v710 = vld [vmem:[#allocation8 + $0x4] sm:$0xf]
    %v711 = vld [vmem:[#allocation8 + $0x8] sm:$0xf]
    %v712 = vld [vmem:[#allocation8 + $0xc] sm:$0xf]
    %v713 = vld [vmem:[#allocation8 + $0x10] sm:$0xf]
    %v714 = vld [vmem:[#allocation8 + $0x14] sm:$0xf]
    %v715 = vld [vmem:[#allocation8 + $0x18] sm:$0xf]
    %v716 = vld [vmem:[#allocation8 + $0x1c] sm:$0xf]
    %v717 = vld [vmem:[#allocation8 + $0x20] sm:$0xf]
    %v718 = vld [vmem:[#allocation8 + $0x24] sm:$0xf]
    %v719 = vld [vmem:[#allocation8 + $0x28] sm:$0xf]
    %v720 = vld [vmem:[#allocation8 + $0x2c] sm:$0xf]
    %v721 = vld [vmem:[#allocation8 + $0x30] sm:$0xf]
    %v722 = vld [vmem:[#allocation8 + $0x34] sm:$0xf]
    %v723 = vld [vmem:[#allocation8 + $0x38] sm:$0xf]
    %v724 = vld [vmem:[#allocation8 + $0x3c] sm:$0xf]
    %v725 = vld [vmem:[#allocation8 + $0x40] sm:$0xf]
    %v726 = vld [vmem:[#allocation8 + $0x44] sm:$0xf]
    %v727 = vld [vmem:[#allocation8 + $0x48] sm:$0xf]
    %v728 = vld [vmem:[#allocation8 + $0x4c] sm:$0xf]
    %v729 = vld [vmem:[#allocation8 + $0x50] sm:$0xf]
    %v730 = vld [vmem:[#allocation8 + $0x54] sm:$0xf]
    %v731 = vld [vmem:[#allocation8 + $0x58] sm:$0xf]
    %v732 = vld [vmem:[#allocation8 + $0x5c] sm:$0xf]
    %v733 = vld [vmem:[#allocation8 + $0x60] sm:$0xf]
    %v734 = vld [vmem:[#allocation8 + $0x64] sm:$0xf]
    %v735 = vld [vmem:[#allocation8 + $0x68] sm:$0xf]
    %v736 = vld [vmem:[#allocation8 + $0x6c] sm:$0xf]
    %v737 = vld [vmem:[#allocation8 + $0x70] sm:$0xf]
    %v738 = vld [vmem:[#allocation8 + $0x74] sm:$0xf]
    %v739 = vld [vmem:[#allocation8 + $0x78] sm:$0xf]
    %v740 = vld [vmem:[#allocation8 + $0x7c] sm:$0xf]
    %v741 = vld [vmem:[%s9] sm:$0x1]
    %v743 = vlaneseq
    %v744 = vshrl.u32 %v743, 7
    %v745 = vsub.s32 0, %v744
    %v746 = vrot.slane %v741, %v745
    %v780 = vunpack.c.l.b16 %v709
    %v781 = vunpack.c.l.b16 %v710
    %v782 = vunpack.c.l.b16 %v711
    %v783 = vunpack.c.l.b16 %v712
    %v784 = vunpack.c.l.b16 %v713
    %v785 = vunpack.c.l.b16 %v714
    %v786 = vunpack.c.l.b16 %v715
    %v787 = vunpack.c.l.b16 %v716
    %v788 = vunpack.c.l.b16 %v717
    %v789 = vunpack.c.l.b16 %v718
    %v790 = vunpack.c.l.b16 %v719
    %v791 = vunpack.c.l.b16 %v720
    %v792 = vunpack.c.l.b16 %v721
    %v793 = vunpack.c.l.b16 %v722
    %v794 = vunpack.c.l.b16 %v723
    %v795 = vunpack.c.l.b16 %v724
    %v796 = vunpack.c.l.b16 %v725
    %v797 = vunpack.c.l.b16 %v726
    %v798 = vunpack.c.l.b16 %v727
    %v799 = vunpack.c.l.b16 %v728
    %v800 = vunpack.c.l.b16 %v729
    %v801 = vunpack.c.l.b16 %v730
    %v802 = vunpack.c.l.b16 %v731
    %v803 = vunpack.c.l.b16 %v732
    %v804 = vunpack.c.l.b16 %v733
    %v805 = vunpack.c.l.b16 %v734
    %v806 = vunpack.c.l.b16 %v735
    %v807 = vunpack.c.l.b16 %v736
    %v808 = vunpack.c.l.b16 %v737
    %v809 = vunpack.c.l.b16 %v738
    %v810 = vunpack.c.l.b16 %v739
    %v811 = vunpack.c.l.b16 %v740
    %v812 = vpack.c.b16 %v781, %v780
    %v813 = vpack.c.b16 %v783, %v782
    %v814 = vpack.c.b16 %v785, %v784
    %v815 = vpack.c.b16 %v787, %v786
    %v816 = vpack.c.b16 %v789, %v788
    %v817 = vpack.c.b16 %v791, %v790
    %v818 = vpack.c.b16 %v793, %v792
    %v819 = vpack.c.b16 %v795, %v794
    %v820 = vpack.c.b16 %v797, %v796
    %v821 = vpack.c.b16 %v799, %v798
    %v822 = vpack.c.b16 %v801, %v800
    %v823 = vpack.c.b16 %v803, %v802
    %v824 = vpack.c.b16 %v805, %v804
    %v825 = vpack.c.b16 %v807, %v806
    %v826 = vpack.c.b16 %v809, %v808
    %v827 = vpack.c.b16 %v811, %v810
    %844 = vmatprep.subr.bf16.mxu0 0
    %845 = vmatpush1.bf16.msra.mxu0 %v812
    %846 = vmatprep.subr.bf16.mxu0 0
    %847 = vmatpush1.bf16.msra.mxu0 %v813
    %848 = vmatprep.subr.bf16.mxu0 0
    %849 = vmatpush1.bf16.msra.mxu0 %v814
    %850 = vmatprep.subr.bf16.mxu0 0
    %851 = vmatpush1.bf16.msra.mxu0 %v815
    %852 = vmatprep.subr.bf16.mxu0 0
    %853 = vmatpush1.bf16.msra.mxu0 %v816
    %854 = vmatprep.subr.bf16.mxu0 0
    %855 = vmatpush1.bf16.msra.mxu0 %v817
    %856 = vmatprep.subr.bf16.mxu0 0
    %857 = vmatpush1.bf16.msra.mxu0 %v818
    %858 = vmatprep.subr.bf16.mxu0 0
    %859 = vmatpush1.bf16.msra.mxu0 %v819
    %860 = vmatprep.subr.bf16.mxu0 0
    %861 = vmatpush1.bf16.msra.mxu0 %v820
    %862 = vmatprep.subr.bf16.mxu0 0
    %863 = vmatpush1.bf16.msra.mxu0 %v821
    %864 = vmatprep.subr.bf16.mxu0 0
    %865 = vmatpush1.bf16.msra.mxu0 %v822
    %866 = vmatprep.subr.bf16.mxu0 0
    %867 = vmatpush1.bf16.msra.mxu0 %v823
    %868 = vmatprep.subr.bf16.mxu0 0
    %869 = vmatpush1.bf16.msra.mxu0 %v824
    %870 = vmatprep.subr.bf16.mxu0 0
    %871 = vmatpush1.bf16.msra.mxu0 %v825
    %872 = vmatprep.subr.bf16.mxu0 0
    %873 = vmatpush1.bf16.msra.mxu0 %v826
    %874 = vmatprep.subr.bf16.mxu0 0
    %875 = vmatpush1.bf16.msra.mxu0 %v827
    %876 = vmatprep.mubr.bf16.mxu0 %v708
    %877 = vmatmul.mubr.bf16.gmra.mrb[0].mxu0 %v707
    %v878 = vpop.f32.mrb[0].mxu0
    %v879 = vadd.f32 %v746, %v878
    %v880 = vpop.f32.mrb[0].mxu0
    %v881 = vpop.f32.mrb[0].mxu0
    %v882 = vpop.f32.mrb[0].mxu0
    %883 = vdwg.mxu0
    %884 = vst [vmem:[%s10] sm:$0xff] %v879
    // Predicated region
    $region58: #{actor_forward.1} parent=1 // pred_check
      _
    $region59: #{actor_forward.1} parent=1 // pred_check_branch
      %886 = sbr.rel (0) target = $region61
    $region60: #{actor_forward.1} parent=1 // pred_region
      _
    $region61: #{actor_forward.1} parent=1 // pred_fallthru
      _
    // Predicated region
    $region62: #{actor_forward.1} parent=1 // pred_check
      _
    $region63: #{actor_forward.1} parent=1 // pred_check_branch
      %888 = sbr.rel (0) target = $region65
    $region64: #{actor_forward.1} parent=1 // pred_region
      _
    $region65: #{actor_forward.1} parent=1 // pred_fallthru
      _
    %889 = vsyncpa [#allocation3], 1
    %890 = vsyncpa [#allocation7], 1
    %891 = vsyncpa [#allocation4], 1

</llo_original>
